<compile_context>
chip_gen: v7x
topology: tpu7x:2x2x1
jax: 0.10.0
libtpu: 0.0.40
codegen_flags: <defaults>
</compile_context>

<pallas_src>
import jax
import jax.numpy as jnp
from jax.experimental import pallas as pl
from jax.experimental.pallas import tpu as pltpu

Z_DIM = 100
IN_F = Z_DIM + 10          # 110
H = 256
OUT_F = 784                # logical output width (6*128 + 16)
DEFAULT_TILE_B = 512       # batch tile for large batches


def _round_up(n, m):
    return ((n + m - 1) // m) * m


def _choose_tile_b(B):
    """Pick a batch tile: big for throughput, but >= 2 grid steps when the
    batch is large enough so the 'parallel' grid axis can shard across the
    two TensorCores on v7x."""
    b8 = _round_up(B, 8)
    tile_b = min(DEFAULT_TILE_B, b8)
    if b8 >= 16 and (b8 + tile_b - 1) // tile_b < 2:
        tile_b = _round_up((b8 + 1) // 2, 8)
    return tile_b


def generator_kernel(x_ref, w1_ref, b1_ref, w2_ref, b2_ref, w3_ref, b3_ref, o_ref):
    # Whole MLP for one batch tile: three MXU matmuls (bf16 in, f32 acc),
    # bias/ReLU on the VPU, tanh on the EUP (bf16 input).
    x = x_ref[...].astype(jnp.bfloat16)                                   # [T, 110]
    h1 = jnp.dot(x, w1_ref[...], preferred_element_type=jnp.float32) + b1_ref[...]
    h1 = jnp.maximum(h1, 0.0).astype(jnp.bfloat16)                        # ReLU
    h2 = jnp.dot(h1, w2_ref[...], preferred_element_type=jnp.float32) + b2_ref[...]
    h2 = jnp.maximum(h2, 0.0).astype(jnp.bfloat16)                        # ReLU
    y = jnp.dot(h2, w3_ref[...], preferred_element_type=jnp.float32) + b3_ref[...]
    o_ref[...] = jnp.tanh(y.astype(jnp.bfloat16)).astype(o_ref.dtype)     # Tanh, bf16 out


def prepare_params(params):
    """Cast weights to bf16, keep biases f32. No padding needed (full-dim blocks)."""
    w1, b1, w2, b2, w3, b3 = params
    return (w1.astype(jnp.bfloat16), b1.astype(jnp.float32),
            w2.astype(jnp.bfloat16), b2.astype(jnp.float32),
            w3.astype(jnp.bfloat16), b3.astype(jnp.float32))


def generator_forward(x, prepared_params, tile_b=None):
    w1, b1, w2, b2, w3, b3 = prepared_params
    B = x.shape[0]
    if tile_b is None:
        tile_b = _choose_tile_b(B)
    B_pad = _round_up(B, tile_b)

    x_in = x
    if B_pad != B:
        # Only row padding (when B is not a tile multiple); no column pad, no cast.
        x_in = jnp.zeros((B_pad, IN_F), x.dtype).at[:B, :].set(x)

    grid = (B_pad // tile_b,)
    rep = lambda shape: pl.BlockSpec(shape, lambda i: (0, 0))  # grid-invariant (resident) weights

    out = pl.pallas_call(
        generator_kernel,
        out_shape=jax.ShapeDtypeStruct((B_pad, OUT_F), jnp.bfloat16),
        grid_spec=pltpu.PrefetchScalarGridSpec(
            num_scalar_prefetch=0,
            grid=grid,
            in_specs=[
                pl.BlockSpec((tile_b, IN_F), lambda i: (i, 0)),   # x tile (110 = full dim)
                rep((IN_F, H)), rep((1, H)),                      # layer 1
                rep((H, H)), rep((1, H)),                         # layer 2
                rep((H, OUT_F)), rep((1, OUT_F)),                 # layer 3 (784 = full dim)
            ],
            out_specs=pl.BlockSpec((tile_b, OUT_F), lambda i: (i, 0)),
        ),
        compiler_params=pltpu.CompilerParams(
            dimension_semantics=("parallel",),
        ),
    )(x_in, w1, b1, w2, b2, w3, b3)

    if B_pad != B:
        out = out[:B]
    return out


def init_params(key):
    # Deterministic init mimicking torch.nn.Linear default: U(-1/sqrt(fan_in), +1/sqrt(fan_in))
    def linear(key, fan_in, fan_out):
        kw, kb = jax.random.split(key)
        bound = 1.0 / jnp.sqrt(fan_in)
        w = jax.random.uniform(kw, (fan_in, fan_out), jnp.float32, -bound, bound)
        b = jax.random.uniform(kb, (1, fan_out), jnp.float32, -bound, bound)
        return w, b

    k1, k2, k3 = jax.random.split(key, 3)
    w1, b1 = linear(k1, IN_F, H)
    w2, b2 = linear(k2, H, H)
    w3, b3 = linear(k3, H, OUT_F)
    return w1, b1, w2, b2, w3, b3


def _reference(x, params):
    # Pure-JAX reference mimicking the bf16-weight / f32-accumulate math.
    w1, b1, w2, b2, w3, b3 = params
    xb = x.astype(jnp.bfloat16).astype(jnp.float32)
    w1b = w1.astype(jnp.bfloat16).astype(jnp.float32)
    w2b = w2.astype(jnp.bfloat16).astype(jnp.float32)
    w3b = w3.astype(jnp.bfloat16).astype(jnp.float32)
    h1 = jnp.maximum(xb @ w1b + b1, 0.0).astype(jnp.bfloat16).astype(jnp.float32)
    h2 = jnp.maximum(h1 @ w2b + b2, 0.0).astype(jnp.bfloat16).astype(jnp.float32)
    return jnp.tanh(h2 @ w3b + b3)


if __name__ == "__main__":
    key = jax.random.PRNGKey(0)
    k_x1, k_x2, k_p = jax.random.split(key, 3)

    params = init_params(k_p)
    prepared = prepare_params(params)

    # Small demo batch: z (100 dims) ++ one-hot label (10 dims) -> 110 features.
    B1 = 8
    z = jax.random.normal(k_x1, (B1, Z_DIM), dtype=jnp.float32)
    labels = jax.nn.one_hot(jnp.arange(B1) % 10, 10, dtype=jnp.float32)
    x1 = jnp.concatenate([z, labels], axis=1)

    out1 = jax.block_until_ready(generator_forward(x1, prepared))
    assert out1.shape == (B1, OUT_F)
    assert out1.dtype == jnp.bfloat16
    ref1 = _reference(x1, params)
    err1 = float(jnp.max(jnp.abs(out1.astype(jnp.float32) - ref1)))
    assert err1 < 2e-2, err1

    # Larger batch: exercises row padding and a >=2-step grid (megacore split).
    B2 = 300
    x2 = jax.random.normal(k_x2, (B2, IN_F), dtype=jnp.float32)
    out2 = jax.block_until_ready(generator_forward(x2, prepared))
    assert out2.shape == (B2, OUT_F)
    ref2 = _reference(x2, params)
    err2 = float(jnp.max(jnp.abs(out2.astype(jnp.float32) - ref2)))
    assert err2 < 2e-2, err2

    # Loose check against the pure-f32 torch-equivalent math (bf16 quantization only).
    w1, b1, w2, b2, w3, b3 = params
    ref_f32 = jnp.tanh(jnp.maximum(jnp.maximum(x1 @ w1 + b1, 0.0) @ w2 + b2, 0.0) @ w3 + b3)
    assert jnp.allclose(out1.astype(jnp.float32), ref_f32, atol=6e-2, rtol=6e-2)

    print("KERNEL_OK")
</pallas_src>

<mosaic_0001>
module attributes {stable_mosaic.version = 11 : i64} {
  func.func @generator_kernel(%arg0: i32, %arg1: memref<8x110xf32, #tpu.memory_space<vmem>>, %arg2: memref<110x256xbf16, #tpu.memory_space<vmem>>, %arg3: memref<1x256xf32, #tpu.memory_space<vmem>>, %arg4: memref<256x256xbf16, #tpu.memory_space<vmem>>, %arg5: memref<1x256xf32, #tpu.memory_space<vmem>>, %arg6: memref<256x784xbf16, #tpu.memory_space<vmem>>, %arg7: memref<1x784xf32, #tpu.memory_space<vmem>>, %arg8: memref<8x784xbf16, #tpu.memory_space<vmem>>) attributes {dimension_semantics = [#tpu.dimension_semantics<parallel>], iteration_bounds = array<i64: 1>, scalar_prefetch = 0 : i64, scratch_operands = 0 : i64, tpu.core_type = #tpu.core_type<tc>, window_params = [{transform_indices = @transform_0, window_bounds = array<i64: 8, 110>}, {pipeline_mode = #tpu.pipeline_mode<synchronous>, transform_indices = @transform_1, window_bounds = array<i64: 110, 256>}, {pipeline_mode = #tpu.pipeline_mode<synchronous>, transform_indices = @transform_2, window_bounds = array<i64: 1, 256>}, {pipeline_mode = #tpu.pipeline_mode<synchronous>, transform_indices = @transform_3, window_bounds = array<i64: 256, 256>}, {pipeline_mode = #tpu.pipeline_mode<synchronous>, transform_indices = @transform_4, window_bounds = array<i64: 1, 256>}, {pipeline_mode = #tpu.pipeline_mode<synchronous>, transform_indices = @transform_5, window_bounds = array<i64: 256, 784>}, {pipeline_mode = #tpu.pipeline_mode<synchronous>, transform_indices = @transform_6, window_bounds = array<i64: 1, 784>}, {transform_indices = @transform_7, window_bounds = array<i64: 8, 784>}]} {
    %c0 = arith.constant 0 : index
    %c0_0 = arith.constant 0 : index
    %0 = vector.load %arg1[%c0, %c0_0] : memref<8x110xf32, #tpu.memory_space<vmem>>, vector<8x110xf32>
    %1 = arith.truncf %0 : vector<8x110xf32> to vector<8x110xbf16>
    %c0_1 = arith.constant 0 : index
    %c0_2 = arith.constant 0 : index
    %2 = vector.load %arg2[%c0_1, %c0_2] : memref<110x256xbf16, #tpu.memory_space<vmem>>, vector<110x256xbf16>
    %cst = arith.constant dense<0.000000e+00> : vector<8x256xf32>
    %3 = tpu.matmul %1, %2, %cst {dimension_numbers = #tpu.dot_dimension_numbers<[1], [0], [0], [1], [0, 0, 1, 1], [], []>} : vector<8x110xbf16>, vector<110x256xbf16>, vector<8x256xf32> -> vector<8x256xf32>
    %c0_3 = arith.constant 0 : index
    %c0_4 = arith.constant 0 : index
    %4 = vector.load %arg3[%c0_3, %c0_4] : memref<1x256xf32, #tpu.memory_space<vmem>>, vector<1x256xf32>
    %5 = vector.broadcast %4 : vector<1x256xf32> to vector<8x256xf32>
    %6 = arith.addf %3, %5 : vector<8x256xf32>
    %cst_5 = arith.constant 0.000000e+00 : f32
    %7 = vector.broadcast %cst_5 : f32 to vector<8x256xf32>
    %8 = arith.maximumf %6, %7 : vector<8x256xf32>
    %9 = arith.truncf %8 : vector<8x256xf32> to vector<8x256xbf16>
    %c0_6 = arith.constant 0 : index
    %c0_7 = arith.constant 0 : index
    %10 = vector.load %arg4[%c0_6, %c0_7] : memref<256x256xbf16, #tpu.memory_space<vmem>>, vector<256x256xbf16>
    %cst_8 = arith.constant dense<0.000000e+00> : vector<8x256xf32>
    %11 = tpu.matmul %9, %10, %cst_8 {dimension_numbers = #tpu.dot_dimension_numbers<[1], [0], [0], [1], [0, 0, 1, 1], [], []>} : vector<8x256xbf16>, vector<256x256xbf16>, vector<8x256xf32> -> vector<8x256xf32>
    %c0_9 = arith.constant 0 : index
    %c0_10 = arith.constant 0 : index
    %12 = vector.load %arg5[%c0_9, %c0_10] : memref<1x256xf32, #tpu.memory_space<vmem>>, vector<1x256xf32>
    %13 = vector.broadcast %12 : vector<1x256xf32> to vector<8x256xf32>
    %14 = arith.addf %11, %13 : vector<8x256xf32>
    %cst_11 = arith.constant 0.000000e+00 : f32
    %15 = vector.broadcast %cst_11 : f32 to vector<8x256xf32>
    %16 = arith.maximumf %14, %15 : vector<8x256xf32>
    %17 = arith.truncf %16 : vector<8x256xf32> to vector<8x256xbf16>
    %c0_12 = arith.constant 0 : index
    %c0_13 = arith.constant 0 : index
    %18 = vector.load %arg6[%c0_12, %c0_13] : memref<256x784xbf16, #tpu.memory_space<vmem>>, vector<256x784xbf16>
    %cst_14 = arith.constant dense<0.000000e+00> : vector<8x784xf32>
    %19 = tpu.matmul %17, %18, %cst_14 {dimension_numbers = #tpu.dot_dimension_numbers<[1], [0], [0], [1], [0, 0, 1, 1], [], []>} : vector<8x256xbf16>, vector<256x784xbf16>, vector<8x784xf32> -> vector<8x784xf32>
    %c0_15 = arith.constant 0 : index
    %c0_16 = arith.constant 0 : index
    %20 = vector.load %arg7[%c0_15, %c0_16] : memref<1x784xf32, #tpu.memory_space<vmem>>, vector<1x784xf32>
    %21 = vector.broadcast %20 : vector<1x784xf32> to vector<8x784xf32>
    %22 = arith.addf %19, %21 : vector<8x784xf32>
    %23 = arith.truncf %22 : vector<8x784xf32> to vector<8x784xbf16>
    %24 = math.tanh %23 : vector<8x784xbf16>
    %c0_17 = arith.constant 0 : index
    %c0_18 = arith.constant 0 : index
    %25 = vector.load %arg8[%c0_17, %c0_18] : memref<8x784xbf16, #tpu.memory_space<vmem>>, vector<8x784xbf16>
    tpu.vector_store %arg8[%c0_17, %c0_18], %24 {strides = array<i32>} : memref<8x784xbf16, #tpu.memory_space<vmem>>, vector<8x784xbf16>,
    return
  }
  func.func @transform_0(%arg0: i32) -> (i32, i32) {
    %c0_i32 = arith.constant 0 : i32
    %c0_i32_0 = arith.constant 0 : i32
    return %arg0, %c0_i32 : i32, i32
  }
  func.func @transform_1(%arg0: i32) -> (i32, i32) {
    %c0_i32 = arith.constant 0 : i32
    %c0_i32_0 = arith.constant 0 : i32
    %c0_i32_1 = arith.constant 0 : i32
    return %c0_i32, %c0_i32_0 : i32, i32
  }
  func.func @transform_2(%arg0: i32) -> (i32, i32) {
    %c0_i32 = arith.constant 0 : i32
    %c0_i32_0 = arith.constant 0 : i32
    %c0_i32_1 = arith.constant 0 : i32
    return %c0_i32, %c0_i32_0 : i32, i32
  }
  func.func @transform_3(%arg0: i32) -> (i32, i32) {
    %c0_i32 = arith.constant 0 : i32
    %c0_i32_0 = arith.constant 0 : i32
    %c0_i32_1 = arith.constant 0 : i32
    return %c0_i32, %c0_i32_0 : i32, i32
  }
  func.func @transform_4(%arg0: i32) -> (i32, i32) {
    %c0_i32 = arith.constant 0 : i32
    %c0_i32_0 = arith.constant 0 : i32
    %c0_i32_1 = arith.constant 0 : i32
    return %c0_i32, %c0_i32_0 : i32, i32
  }
  func.func @transform_5(%arg0: i32) -> (i32, i32) {
    %c0_i32 = arith.constant 0 : i32
    %c0_i32_0 = arith.constant 0 : i32
    %c0_i32_1 = arith.constant 0 : i32
    return %c0_i32, %c0_i32_0 : i32, i32
  }
  func.func @transform_6(%arg0: i32) -> (i32, i32) {
    %c0_i32 = arith.constant 0 : i32
    %c0_i32_0 = arith.constant 0 : i32
    %c0_i32_1 = arith.constant 0 : i32
    return %c0_i32, %c0_i32_0 : i32, i32
  }
  func.func @transform_7(%arg0: i32) -> (i32, i32) {
    %c0_i32 = arith.constant 0 : i32
    %c0_i32_0 = arith.constant 0 : i32
    return %arg0, %c0_i32 : i32, i32
  }
}

</mosaic_0001>

<llo_original>
// kernel: tpu_custom_call.1
$region0: #{tpu_custom_call.1}
  #allocation0 [shape = 'u32[]', space=smem, size = 0x4, offset = 0x4, fixed_abs, tag = 'smem constant byte address 0x4 - core index']
  #allocation1 [shape = 'u32[144,128]{1,0:T(1,128)}', space=vmem, size = 0x12000, scoped, tag = 'internal scratch']
  %s0 = inlined_call_operand.vmem [shape: f32[8,110], index: 0, kind: input, shape index: {}]
  %s1 = inlined_call_operand.vmem [shape: bf16[110,256], index: 1, kind: input, shape index: {}]
  %s2 = inlined_call_operand.vmem [shape: f32[1,256], index: 2, kind: input, shape index: {}]
  %s3 = inlined_call_operand.vmem [shape: bf16[256,256], index: 3, kind: input, shape index: {}]
  %s4 = inlined_call_operand.vmem [shape: f32[1,256], index: 4, kind: input, shape index: {}]
  %s5 = inlined_call_operand.vmem [shape: bf16[256,784], index: 5, kind: input, shape index: {}]
  %s6 = inlined_call_operand.vmem [shape: f32[1,784], index: 6, kind: input, shape index: {}]
  %s7 = inlined_call_operand.hbm [shape: bf16[8,784], index: 7, kind: output, shape index: {}]
  %s8 = sld [smem:[#allocation0]]
  $region38: #{tpu_custom_call.1} parent=0
    _
  %s10 = ssub.s32 1, %s8
  %s11 = scalar_select 0, %s10, %s8
  $region1: #{tpu_custom_call.1} parent=0
    #allocation2 [shape = 'u8[14336]{0}', space=vmem, size = 0x3800, scoped, tag = 'output window, operand 0, single buffered']
    #allocation3 [shape = 's32[1]{0}', space=sflag, size = 0x4, scoped, tag = 'scoped memory for tpu_custom_call.1']
    %12 = vsyncpa [#allocation3], 0
    // Predicated region
    $region2: #{tpu_custom_call.1} parent=1 // pred_check
      _
    $region3: #{tpu_custom_call.1} parent=1 // pred_check_branch
      %14 = sbr.rel (0) target = $region5
    $region4: #{tpu_custom_call.1} parent=1 // pred_region
      _
    $region5: #{tpu_custom_call.1} parent=1 // pred_fallthru
      _
    // Predicated region
    $region6: #{tpu_custom_call.1} parent=1 // pred_check
      _
    $region7: #{tpu_custom_call.1} parent=1 // pred_check_branch
      %16 = sbr.rel (0) target = $region9
    $region8: #{tpu_custom_call.1} parent=1 // pred_region
      _
    $region9: #{tpu_custom_call.1} parent=1 // pred_fallthru
      _
    // Predicated region
    $region10: #{tpu_custom_call.1} parent=1 // pred_check
      _
    $region11: #{tpu_custom_call.1} parent=1 // pred_check_branch
      %18 = sbr.rel (0) target = $region13
    $region12: #{tpu_custom_call.1} parent=1 // pred_region
      _
    $region13: #{tpu_custom_call.1} parent=1 // pred_fallthru
      _
    // Predicated region
    $region14: #{tpu_custom_call.1} parent=1 // pred_check
      _
    $region15: #{tpu_custom_call.1} parent=1 // pred_check_branch
      %20 = sbr.rel (0) target = $region17
    $region16: #{tpu_custom_call.1} parent=1 // pred_region
      _
    $region17: #{tpu_custom_call.1} parent=1 // pred_fallthru
      _
    // Predicated region
    $region18: #{tpu_custom_call.1} parent=1 // pred_check
      _
    $region19: #{tpu_custom_call.1} parent=1 // pred_check_branch
      %22 = sbr.rel (0) target = $region21
    $region20: #{tpu_custom_call.1} parent=1 // pred_region
      _
    $region21: #{tpu_custom_call.1} parent=1 // pred_fallthru
      _
    // Predicated region
    $region22: #{tpu_custom_call.1} parent=1 // pred_check
      _
    $region23: #{tpu_custom_call.1} parent=1 // pred_check_branch
      %24 = sbr.rel (0) target = $region25
    $region24: #{tpu_custom_call.1} parent=1 // pred_region
      _
    $region25: #{tpu_custom_call.1} parent=1 // pred_fallthru
      _
    // Predicated region
    $region26: #{tpu_custom_call.1} parent=1 // pred_check
      _
    $region27: #{tpu_custom_call.1} parent=1 // pred_check_branch
      %26 = sbr.rel (0) target = $region29
    $region28: #{tpu_custom_call.1} parent=1 // pred_region
      _
    $region29: #{tpu_custom_call.1} parent=1 // pred_fallthru
      _
    %v28 = vld [vmem:[%s0] sm:$0xff]
    %v29 = vpack.c.bf16 %v28, %v28
    %v30 = vld [vmem:[%s1] sm:$0xff]
    %v31 = vld [vmem:[%s1 + $0x8] sm:$0xff]
    %v32 = vld [vmem:[%s1 + $0x10] sm:$0xff]
    %v33 = vld [vmem:[%s1 + $0x18] sm:$0xff]
    %v34 = vld [vmem:[%s1 + $0x20] sm:$0xff]
    %v35 = vld [vmem:[%s1 + $0x28] sm:$0xff]
    %v36 = vld [vmem:[%s1 + $0x30] sm:$0xff]
    %v37 = vld [vmem:[%s1 + $0x38] sm:$0xff]
    %v38 = vld [vmem:[%s1 + $0x40] sm:$0xff]
    %v39 = vld [vmem:[%s1 + $0x48] sm:$0xff]
    %v40 = vld [vmem:[%s1 + $0x50] sm:$0xff]
    %v41 = vld [vmem:[%s1 + $0x58] sm:$0xff]
    %v42 = vld [vmem:[%s1 + $0x60] sm:$0xff]
    %v43 = vld [vmem:[%s1 + $0x68] sm:$0x77]
    %v44 = vld [vmem:[%s2] sm:$0x3]
    %v46 = vlaneseq
    %v47 = vshrl.u32 %v46, 7
    %v48 = vsub.s32 0, %v47
    %v49 = vrot.slane %v44, %v48
    %v50 = vlaneseq
    %v51 = vshrl.u32 %v50, 7
    %v52 = vsub.s32 1, %v51
    %v53 = vrot.slane %v44, %v52
    %v70 = vunpack.c.l.b16 %v30
    %v71 = vunpack.c.h.b16 %v30
    %v72 = vunpack.c.l.b16 %v31
    %v73 = vunpack.c.h.b16 %v31
    %v74 = vunpack.c.l.b16 %v32
    %v75 = vunpack.c.h.b16 %v32
    %v76 = vunpack.c.l.b16 %v33
    %v77 = vunpack.c.h.b16 %v33
    %v78 = vunpack.c.l.b16 %v34
    %v79 = vunpack.c.h.b16 %v34
    %v80 = vunpack.c.l.b16 %v35
    %v81 = vunpack.c.h.b16 %v35
    %v82 = vunpack.c.l.b16 %v36
    %v83 = vunpack.c.h.b16 %v36
    %v84 = vunpack.c.l.b16 %v37
    %v85 = vunpack.c.h.b16 %v37
    %v86 = vunpack.c.l.b16 %v38
    %v87 = vunpack.c.h.b16 %v38
    %v88 = vunpack.c.l.b16 %v39
    %v89 = vunpack.c.h.b16 %v39
    %v90 = vunpack.c.l.b16 %v40
    %v91 = vunpack.c.h.b16 %v40
    %v92 = vunpack.c.l.b16 %v41
    %v93 = vunpack.c.h.b16 %v41
    %v94 = vunpack.c.l.b16 %v42
    %v95 = vunpack.c.h.b16 %v42
    %v96 = vunpack.c.l.b16 %v43
    %v97 = vunpack.c.h.b16 %v43
    %v98 = vpack.c.b16 %v72, %v70
    %v99 = vpack.c.b16 %v73, %v71
    %v100 = vpack.c.b16 %v76, %v74
    %v101 = vpack.c.b16 %v77, %v75
    %v102 = vpack.c.b16 %v80, %v78
    %v103 = vpack.c.b16 %v81, %v79
    %v104 = vpack.c.b16 %v84, %v82
    %v105 = vpack.c.b16 %v85, %v83
    %v106 = vpack.c.b16 %v88, %v86
    %v107 = vpack.c.b16 %v89, %v87
    %v108 = vpack.c.b16 %v92, %v90
    %v109 = vpack.c.b16 %v93, %v91
    %v110 = vpack.c.b16 %v96, %v94
    %v111 = vpack.c.b16 %v97, %v95
    %vm124 = vcmask 900096
    %v126 = vsel %vm124, %v29, 0
    %vm128 = vcmask 1046528
    %v130 = vsel %vm128, %v110, 0
    %v133 = vsel %vm128, %v111, 0
    %135 = vmatprep.subr.bf16.mxu0 %v99
    %136 = vmatpush1.bf16.msra.mxu0 %v98
    %137 = vmatprep.subr.bf16.mxu0 %v101
    %138 = vmatpush1.bf16.msra.mxu0 %v100
    %139 = vmatprep.subr.bf16.mxu0 %v103
    %140 = vmatpush1.bf16.msra.mxu0 %v102
    %141 = vmatprep.subr.bf16.mxu0 %v105
    %142 = vmatpush1.bf16.msra.mxu0 %v104
    %143 = vmatprep.subr.bf16.mxu0 %v107
    %144 = vmatpush1.bf16.msra.mxu0 %v106
    %145 = vmatprep.subr.bf16.mxu0 %v109
    %146 = vmatpush1.bf16.msra.mxu0 %v108
    %147 = vmatprep.subr.bf16.mxu0 %v133
    %148 = vmatpush1.bf16.msra.mxu0 %v130
    %149 = vmatprep.subr.bf16.mxu0 0
    %150 = vmatpush1.bf16.msra.mxu0 0
    %151 = vmatprep.subr.bf16.mxu0 0
    %152 = vmatpush1.bf16.msra.mxu0 0
    %153 = vmatprep.subr.bf16.mxu0 0
    %154 = vmatpush1.bf16.msra.mxu0 0
    %155 = vmatprep.subr.bf16.mxu0 0
    %156 = vmatpush1.bf16.msra.mxu0 0
    %157 = vmatprep.subr.bf16.mxu0 0
    %158 = vmatpush1.bf16.msra.mxu0 0
    %159 = vmatprep.subr.bf16.mxu0 0
    %160 = vmatpush1.bf16.msra.mxu0 0
    %161 = vmatprep.subr.bf16.mxu0 0
    %162 = vmatpush1.bf16.msra.mxu0 0
    %163 = vmatprep.subr.bf16.mxu0 0
    %164 = vmatpush1.bf16.msra.mxu0 0
    %165 = vmatprep.subr.bf16.mxu0 0
    %166 = vmatpush1.bf16.msra.mxu0 0
    %167 = vmatprep.mubr.bf16.mxu0 0
    %168 = vmatmul.mubr.bf16.gmra.mrb[0].mxu0 %v126
    %v169 = vpop.f32.mrb[0].mxu0
    %v170 = vadd.f32 %v49, %v169
    %v171 = vpop.f32.mrb[0].mxu0
    %v172 = vadd.f32 %v53, %v171
    %v173 = vpop.f32.mrb[0].mxu0
    %v174 = vpop.f32.mrb[0].mxu0
    %175 = vdwg.mxu0
    %v176 = vmax.f32 %v170, 0.0
    %v177 = vmax.f32 %v172, 0.0
    %v178 = vpack.c.bf16 %v176, %v176
    %v179 = vpack.c.bf16 %v177, %v177
    %v180 = vld [vmem:[%s3] sm:$0xff]
    %v181 = vld [vmem:[%s3 + $0x8] sm:$0xff]
    %v182 = vld [vmem:[%s3 + $0x10] sm:$0xff]
    %v183 = vld [vmem:[%s3 + $0x18] sm:$0xff]
    %v184 = vld [vmem:[%s3 + $0x20] sm:$0xff]
    %v185 = vld [vmem:[%s3 + $0x28] sm:$0xff]
    %v186 = vld [vmem:[%s3 + $0x30] sm:$0xff]
    %v187 = vld [vmem:[%s3 + $0x38] sm:$0xff]
    %v188 = vld [vmem:[%s3 + $0x40] sm:$0xff]
    %v189 = vld [vmem:[%s3 + $0x48] sm:$0xff]
    %v190 = vld [vmem:[%s3 + $0x50] sm:$0xff]
    %v191 = vld [vmem:[%s3 + $0x58] sm:$0xff]
    %v192 = vld [vmem:[%s3 + $0x60] sm:$0xff]
    %v193 = vld [vmem:[%s3 + $0x68] sm:$0xff]
    %v194 = vld [vmem:[%s3 + $0x70] sm:$0xff]
    %v195 = vld [vmem:[%s3 + $0x78] sm:$0xff]
    %v196 = vld [vmem:[%s3 + $0x80] sm:$0xff]
    %v197 = vld [vmem:[%s3 + $0x88] sm:$0xff]
    %v198 = vld [vmem:[%s3 + $0x90] sm:$0xff]
    %v199 = vld [vmem:[%s3 + $0x98] sm:$0xff]
    %v200 = vld [vmem:[%s3 + $0xa0] sm:$0xff]
    %v201 = vld [vmem:[%s3 + $0xa8] sm:$0xff]
    %v202 = vld [vmem:[%s3 + $0xb0] sm:$0xff]
    %v203 = vld [vmem:[%s3 + $0xb8] sm:$0xff]
    %v204 = vld [vmem:[%s3 + $0xc0] sm:$0xff]
    %v205 = vld [vmem:[%s3 + $0xc8] sm:$0xff]
    %v206 = vld [vmem:[%s3 + $0xd0] sm:$0xff]
    %v207 = vld [vmem:[%s3 + $0xd8] sm:$0xff]
    %v208 = vld [vmem:[%s3 + $0xe0] sm:$0xff]
    %v209 = vld [vmem:[%s3 + $0xe8] sm:$0xff]
    %v210 = vld [vmem:[%s3 + $0xf0] sm:$0xff]
    %v211 = vld [vmem:[%s3 + $0xf8] sm:$0xff]
    %v212 = vld [vmem:[%s4] sm:$0x3]
    %v214 = vlaneseq
    %v215 = vshrl.u32 %v214, 7
    %v216 = vsub.s32 0, %v215
    %v217 = vrot.slane %v212, %v216
    %v218 = vlaneseq
    %v219 = vshrl.u32 %v218, 7
    %v220 = vsub.s32 1, %v219
    %v221 = vrot.slane %v212, %v220
    %v256 = vunpack.c.l.b16 %v180
    %v257 = vunpack.c.h.b16 %v180
    %v258 = vunpack.c.l.b16 %v181
    %v259 = vunpack.c.h.b16 %v181
    %v260 = vunpack.c.l.b16 %v182
    %v261 = vunpack.c.h.b16 %v182
    %v262 = vunpack.c.l.b16 %v183
    %v263 = vunpack.c.h.b16 %v183
    %v264 = vunpack.c.l.b16 %v184
    %v265 = vunpack.c.h.b16 %v184
    %v266 = vunpack.c.l.b16 %v185
    %v267 = vunpack.c.h.b16 %v185
    %v268 = vunpack.c.l.b16 %v186
    %v269 = vunpack.c.h.b16 %v186
    %v270 = vunpack.c.l.b16 %v187
    %v271 = vunpack.c.h.b16 %v187
    %v272 = vunpack.c.l.b16 %v188
    %v273 = vunpack.c.h.b16 %v188
    %v274 = vunpack.c.l.b16 %v189
    %v275 = vunpack.c.h.b16 %v189
    %v276 = vunpack.c.l.b16 %v190
    %v277 = vunpack.c.h.b16 %v190
    %v278 = vunpack.c.l.b16 %v191
    %v279 = vunpack.c.h.b16 %v191
    %v280 = vunpack.c.l.b16 %v192
    %v281 = vunpack.c.h.b16 %v192
    %v282 = vunpack.c.l.b16 %v193
    %v283 = vunpack.c.h.b16 %v193
    %v284 = vunpack.c.l.b16 %v194
    %v285 = vunpack.c.h.b16 %v194
    %v286 = vunpack.c.l.b16 %v195
    %v287 = vunpack.c.h.b16 %v195
    %v288 = vunpack.c.l.b16 %v196
    %v289 = vunpack.c.h.b16 %v196
    %v290 = vunpack.c.l.b16 %v197
    %v291 = vunpack.c.h.b16 %v197
    %v292 = vunpack.c.l.b16 %v198
    %v293 = vunpack.c.h.b16 %v198
    %v294 = vunpack.c.l.b16 %v199
    %v295 = vunpack.c.h.b16 %v199
    %v296 = vunpack.c.l.b16 %v200
    %v297 = vunpack.c.h.b16 %v200
    %v298 = vunpack.c.l.b16 %v201
    %v299 = vunpack.c.h.b16 %v201
    %v300 = vunpack.c.l.b16 %v202
    %v301 = vunpack.c.h.b16 %v202
    %v302 = vunpack.c.l.b16 %v203
    %v303 = vunpack.c.h.b16 %v203
    %v304 = vunpack.c.l.b16 %v204
    %v305 = vunpack.c.h.b16 %v204
    %v306 = vunpack.c.l.b16 %v205
    %v307 = vunpack.c.h.b16 %v205
    %v308 = vunpack.c.l.b16 %v206
    %v309 = vunpack.c.h.b16 %v206
    %v310 = vunpack.c.l.b16 %v207
    %v311 = vunpack.c.h.b16 %v207
    %v312 = vunpack.c.l.b16 %v208
    %v313 = vunpack.c.h.b16 %v208
    %v314 = vunpack.c.l.b16 %v209
    %v315 = vunpack.c.h.b16 %v209
    %v316 = vunpack.c.l.b16 %v210
    %v317 = vunpack.c.h.b16 %v210
    %v318 = vunpack.c.l.b16 %v211
    %v319 = vunpack.c.h.b16 %v211
    %v320 = vpack.c.b16 %v258, %v256
    %v321 = vpack.c.b16 %v259, %v257
    %v322 = vpack.c.b16 %v262, %v260
    %v323 = vpack.c.b16 %v263, %v261
    %v324 = vpack.c.b16 %v266, %v264
    %v325 = vpack.c.b16 %v267, %v265
    %v326 = vpack.c.b16 %v270, %v268
    %v327 = vpack.c.b16 %v271, %v269
    %v328 = vpack.c.b16 %v274, %v272
    %v329 = vpack.c.b16 %v275, %v273
    %v330 = vpack.c.b16 %v278, %v276
    %v331 = vpack.c.b16 %v279, %v277
    %v332 = vpack.c.b16 %v282, %v280
    %v333 = vpack.c.b16 %v283, %v281
    %v334 = vpack.c.b16 %v286, %v284
    %v335 = vpack.c.b16 %v287, %v285
    %v336 = vpack.c.b16 %v290, %v288
    %v337 = vpack.c.b16 %v291, %v289
    %v338 = vpack.c.b16 %v294, %v292
    %v339 = vpack.c.b16 %v295, %v293
    %v340 = vpack.c.b16 %v298, %v296
    %v341 = vpack.c.b16 %v299, %v297
    %v342 = vpack.c.b16 %v302, %v300
    %v343 = vpack.c.b16 %v303, %v301
    %v344 = vpack.c.b16 %v306, %v304
    %v345 = vpack.c.b16 %v307, %v305
    %v346 = vpack.c.b16 %v310, %v308
    %v347 = vpack.c.b16 %v311, %v309
    %v348 = vpack.c.b16 %v314, %v312
    %v349 = vpack.c.b16 %v315, %v313
    %v350 = vpack.c.b16 %v318, %v316
    %v351 = vpack.c.b16 %v319, %v317
    %384 = vmatprep.subr.bf16.mxu0 %v321
    %385 = vmatpush1.bf16.msra.mxu0 %v320
    %386 = vmatprep.subr.bf16.mxu0 %v323
    %387 = vmatpush1.bf16.msra.mxu0 %v322
    %388 = vmatprep.subr.bf16.mxu0 %v325
    %389 = vmatpush1.bf16.msra.mxu0 %v324
    %390 = vmatprep.subr.bf16.mxu0 %v327
    %391 = vmatpush1.bf16.msra.mxu0 %v326
    %392 = vmatprep.subr.bf16.mxu0 %v329
    %393 = vmatpush1.bf16.msra.mxu0 %v328
    %394 = vmatprep.subr.bf16.mxu0 %v331
    %395 = vmatpush1.bf16.msra.mxu0 %v330
    %396 = vmatprep.subr.bf16.mxu0 %v333
    %397 = vmatpush1.bf16.msra.mxu0 %v332
    %398 = vmatprep.subr.bf16.mxu0 %v335
    %399 = vmatpush1.bf16.msra.mxu0 %v334
    %400 = vmatprep.subr.bf16.mxu0 %v337
    %401 = vmatpush1.bf16.msra.mxu0 %v336
    %402 = vmatprep.subr.bf16.mxu0 %v339
    %403 = vmatpush1.bf16.msra.mxu0 %v338
    %404 = vmatprep.subr.bf16.mxu0 %v341
    %405 = vmatpush1.bf16.msra.mxu0 %v340
    %406 = vmatprep.subr.bf16.mxu0 %v343
    %407 = vmatpush1.bf16.msra.mxu0 %v342
    %408 = vmatprep.subr.bf16.mxu0 %v345
    %409 = vmatpush1.bf16.msra.mxu0 %v344
    %410 = vmatprep.subr.bf16.mxu0 %v347
    %411 = vmatpush1.bf16.msra.mxu0 %v346
    %412 = vmatprep.subr.bf16.mxu0 %v349
    %413 = vmatpush1.bf16.msra.mxu0 %v348
    %414 = vmatprep.subr.bf16.mxu0 %v351
    %415 = vmatpush1.bf16.msra.mxu0 %v350
    %416 = vmatprep.mubr.bf16.mxu0 %v179
    %417 = vmatmul.mubr.bf16.gmra.mrb[0].mxu0 %v178
    %v418 = vpop.f32.mrb[0].mxu0
    %v419 = vadd.f32 %v217, %v418
    %v420 = vpop.f32.mrb[0].mxu0
    %v421 = vadd.f32 %v221, %v420
    %v422 = vpop.f32.mrb[0].mxu0
    %v423 = vpop.f32.mrb[0].mxu0
    %424 = vdwg.mxu0
    %v425 = vmax.f32 %v419, 0.0
    %v426 = vmax.f32 %v421, 0.0
    %v427 = vpack.c.bf16 %v425, %v425
    %v428 = vpack.c.bf16 %v426, %v426
    %v429 = vld [vmem:[%s5] sm:$0xff]
    %v430 = vld [vmem:[%s5 + $0x8] sm:$0xff]
    %v431 = vld [vmem:[%s5 + $0x10] sm:$0xff]
    %v432 = vld [vmem:[%s5 + $0x18] sm:$0xf]
    %v433 = vld [vmem:[%s5 + $0x1c] sm:$0xff]
    %v434 = vld [vmem:[%s5 + $0x24] sm:$0xff]
    %v435 = vld [vmem:[%s5 + $0x2c] sm:$0xff]
    %v436 = vld [vmem:[%s5 + $0x34] sm:$0xf]
    %v437 = vld [vmem:[%s5 + $0x38] sm:$0xff]
    %v438 = vld [vmem:[%s5 + $0x40] sm:$0xff]
    %v439 = vld [vmem:[%s5 + $0x48] sm:$0xff]
    %v440 = vld [vmem:[%s5 + $0x50] sm:$0xf]
    %v441 = vld [vmem:[%s5 + $0x54] sm:$0xff]
    %v442 = vld [vmem:[%s5 + $0x5c] sm:$0xff]
    %v443 = vld [vmem:[%s5 + $0x64] sm:$0xff]
    %v444 = vld [vmem:[%s5 + $0x6c] sm:$0xf]
    %v445 = vld [vmem:[%s5 + $0x70] sm:$0xff]
    %v446 = vld [vmem:[%s5 + $0x78] sm:$0xff]
    %v447 = vld [vmem:[%s5 + $0x80] sm:$0xff]
    %v448 = vld [vmem:[%s5 + $0x88] sm:$0xf]
    %v449 = vld [vmem:[%s5 + $0x8c] sm:$0xff]
    %v450 = vld [vmem:[%s5 + $0x94] sm:$0xff]
    %v451 = vld [vmem:[%s5 + $0x9c] sm:$0xff]
    %v452 = vld [vmem:[%s5 + $0xa4] sm:$0xf]
    %v453 = vld [vmem:[%s5 + $0xa8] sm:$0xff]
    %v454 = vld [vmem:[%s5 + $0xb0] sm:$0xff]
    %v455 = vld [vmem:[%s5 + $0xb8] sm:$0xff]
    %v456 = vld [vmem:[%s5 + $0xc0] sm:$0xf]
    %v457 = vld [vmem:[%s5 + $0xc4] sm:$0xff]
    %v458 = vld [vmem:[%s5 + $0xcc] sm:$0xff]
    %v459 = vld [vmem:[%s5 + $0xd4] sm:$0xff]
    %v460 = vld [vmem:[%s5 + $0xdc] sm:$0xf]
    %v461 = vld [vmem:[%s5 + $0xe0] sm:$0xff]
    %v462 = vld [vmem:[%s5 + $0xe8] sm:$0xff]
    %v463 = vld [vmem:[%s5 + $0xf0] sm:$0xff]
    %v464 = vld [vmem:[%s5 + $0xf8] sm:$0xf]
    %v465 = vld [vmem:[%s5 + $0xfc] sm:$0xff]
    %v466 = vld [vmem:[%s5 + $0x104] sm:$0xff]
    %v467 = vld [vmem:[%s5 + $0x10c] sm:$0xff]
    %v468 = vld [vmem:[%s5 + $0x114] sm:$0xf]
    %v469 = vld [vmem:[%s5 + $0x118] sm:$0xff]
    %v470 = vld [vmem:[%s5 + $0x120] sm:$0xff]
    %v471 = vld [vmem:[%s5 + $0x128] sm:$0xff]
    %v472 = vld [vmem:[%s5 + $0x130] sm:$0xf]
    %v473 = vld [vmem:[%s5 + $0x134] sm:$0xff]
    %v474 = vld [vmem:[%s5 + $0x13c] sm:$0xff]
    %v475 = vld [vmem:[%s5 + $0x144] sm:$0xff]
    %v476 = vld [vmem:[%s5 + $0x14c] sm:$0xf]
    %v477 = vld [vmem:[%s5 + $0x150] sm:$0xff]
    %v478 = vld [vmem:[%s5 + $0x158] sm:$0xff]
    %v479 = vld [vmem:[%s5 + $0x160] sm:$0xff]
    %v480 = vld [vmem:[%s5 + $0x168] sm:$0xf]
    %v481 = vld [vmem:[%s5 + $0x16c] sm:$0xff]
    %v482 = vld [vmem:[%s5 + $0x174] sm:$0xff]
    %v483 = vld [vmem:[%s5 + $0x17c] sm:$0xff]
    %v484 = vld [vmem:[%s5 + $0x184] sm:$0xf]
    %v485 = vld [vmem:[%s5 + $0x188] sm:$0xff]
    %v486 = vld [vmem:[%s5 + $0x190] sm:$0xff]
    %v487 = vld [vmem:[%s5 + $0x198] sm:$0xff]
    %v488 = vld [vmem:[%s5 + $0x1a0] sm:$0xf]
    %v489 = vld [vmem:[%s5 + $0x1a4] sm:$0xff]
    %v490 = vld [vmem:[%s5 + $0x1ac] sm:$0xff]
    %v491 = vld [vmem:[%s5 + $0x1b4] sm:$0xff]
    %v492 = vld [vmem:[%s5 + $0x1bc] sm:$0xf]
    %v493 = vld [vmem:[%s5 + $0x1c0] sm:$0xff]
    %v494 = vld [vmem:[%s5 + $0x1c8] sm:$0xff]
    %v495 = vld [vmem:[%s5 + $0x1d0] sm:$0xff]
    %v496 = vld [vmem:[%s5 + $0x1d8] sm:$0xf]
    %v497 = vld [vmem:[%s5 + $0x1dc] sm:$0xff]
    %v498 = vld [vmem:[%s5 + $0x1e4] sm:$0xff]
    %v499 = vld [vmem:[%s5 + $0x1ec] sm:$0xff]
    %v500 = vld [vmem:[%s5 + $0x1f4] sm:$0xf]
    %v501 = vld [vmem:[%s5 + $0x1f8] sm:$0xff]
    %v502 = vld [vmem:[%s5 + $0x200] sm:$0xff]
    %v503 = vld [vmem:[%s5 + $0x208] sm:$0xff]
    %v504 = vld [vmem:[%s5 + $0x210] sm:$0xf]
    %v505 = vld [vmem:[%s5 + $0x214] sm:$0xff]
    %v506 = vld [vmem:[%s5 + $0x21c] sm:$0xff]
    %v507 = vld [vmem:[%s5 + $0x224] sm:$0xff]
    %v508 = vld [vmem:[%s5 + $0x22c] sm:$0xf]
    %v509 = vld [vmem:[%s5 + $0x230] sm:$0xff]
    %v510 = vld [vmem:[%s5 + $0x238] sm:$0xff]
    %v511 = vld [vmem:[%s5 + $0x240] sm:$0xff]
    %v512 = vld [vmem:[%s5 + $0x248] sm:$0xf]
    %v513 = vld [vmem:[%s5 + $0x24c] sm:$0xff]
    %v514 = vld [vmem:[%s5 + $0x254] sm:$0xff]
    %v515 = vld [vmem:[%s5 + $0x25c] sm:$0xff]
    %v516 = vld [vmem:[%s5 + $0x264] sm:$0xf]
    %v517 = vld [vmem:[%s5 + $0x268] sm:$0xff]
    %v518 = vld [vmem:[%s5 + $0x270] sm:$0xff]
    %v519 = vld [vmem:[%s5 + $0x278] sm:$0xff]
    %v520 = vld [vmem:[%s5 + $0x280] sm:$0xf]
    %v521 = vld [vmem:[%s5 + $0x284] sm:$0xff]
    %v522 = vld [vmem:[%s5 + $0x28c] sm:$0xff]
    %v523 = vld [vmem:[%s5 + $0x294] sm:$0xff]
    %v524 = vld [vmem:[%s5 + $0x29c] sm:$0xf]
    %v525 = vld [vmem:[%s5 + $0x2a0] sm:$0xff]
    %v526 = vld [vmem:[%s5 + $0x2a8] sm:$0xff]
    %v527 = vld [vmem:[%s5 + $0x2b0] sm:$0xff]
    %v528 = vld [vmem:[%s5 + $0x2b8] sm:$0xf]
    %v529 = vld [vmem:[%s5 + $0x2bc] sm:$0xff]
    %v530 = vld [vmem:[%s5 + $0x2c4] sm:$0xff]
    %v531 = vld [vmem:[%s5 + $0x2cc] sm:$0xff]
    %v532 = vld [vmem:[%s5 + $0x2d4] sm:$0xf]
    %v533 = vld [vmem:[%s5 + $0x2d8] sm:$0xff]
    %v534 = vld [vmem:[%s5 + $0x2e0] sm:$0xff]
    %v535 = vld [vmem:[%s5 + $0x2e8] sm:$0xff]
    %v536 = vld [vmem:[%s5 + $0x2f0] sm:$0xf]
    %v537 = vld [vmem:[%s5 + $0x2f4] sm:$0xff]
    %v538 = vld [vmem:[%s5 + $0x2fc] sm:$0xff]
    %v539 = vld [vmem:[%s5 + $0x304] sm:$0xff]
    %v540 = vld [vmem:[%s5 + $0x30c] sm:$0xf]
    %v541 = vld [vmem:[%s5 + $0x310] sm:$0xff]
    %v542 = vld [vmem:[%s5 + $0x318] sm:$0xff]
    %v543 = vld [vmem:[%s5 + $0x320] sm:$0xff]
    %v544 = vld [vmem:[%s5 + $0x328] sm:$0xf]
    %v545 = vld [vmem:[%s5 + $0x32c] sm:$0xff]
    %v546 = vld [vmem:[%s5 + $0x334] sm:$0xff]
    %v547 = vld [vmem:[%s5 + $0x33c] sm:$0xff]
    %v548 = vld [vmem:[%s5 + $0x344] sm:$0xf]
    %v549 = vld [vmem:[%s5 + $0x348] sm:$0xff]
    %v550 = vld [vmem:[%s5 + $0x350] sm:$0xff]
    %v551 = vld [vmem:[%s5 + $0x358] sm:$0xff]
    %v552 = vld [vmem:[%s5 + $0x360] sm:$0xf]
    %v553 = vld [vmem:[%s5 + $0x364] sm:$0xff]
    %v554 = vld [vmem:[%s5 + $0x36c] sm:$0xff]
    %v555 = vld [vmem:[%s5 + $0x374] sm:$0xff]
    %v556 = vld [vmem:[%s5 + $0x37c] sm:$0xf]
    %v557 = vld [vmem:[%s6] sm:$0x7f]
    %v559 = vlaneseq
    %v560 = vshrl.u32 %v559, 7
    %v561 = vsub.s32 0, %v560
    %v562 = vrot.slane %v557, %v561
    %v563 = vlaneseq
    %v564 = vshrl.u32 %v563, 7
    %v565 = vsub.s32 1, %v564
    %v566 = vrot.slane %v557, %v565
    %v567 = vlaneseq
    %v568 = vshrl.u32 %v567, 7
    %v569 = vsub.s32 2, %v568
    %v570 = vrot.slane %v557, %v569
    %v571 = vlaneseq
    %v572 = vshrl.u32 %v571, 7
    %v573 = vsub.s32 3, %v572
    %v574 = vrot.slane %v557, %v573
    %v575 = vlaneseq
    %v576 = vshrl.u32 %v575, 7
    %v577 = vsub.s32 4, %v576
    %v578 = vrot.slane %v557, %v577
    %v579 = vlaneseq
    %v580 = vshrl.u32 %v579, 7
    %v581 = vsub.s32 5, %v580
    %v582 = vrot.slane %v557, %v581
    %v583 = vlaneseq
    %v584 = vshrl.u32 %v583, 7
    %v585 = vsub.s32 6, %v584
    %v586 = vrot.slane %v557, %v585
    %v722 = vunpack.c.l.b16 %v429
    %v723 = vunpack.c.h.b16 %v429
    %v724 = vunpack.c.l.b16 %v430
    %v725 = vunpack.c.h.b16 %v430
    %v726 = vunpack.c.l.b16 %v431
    %v727 = vunpack.c.h.b16 %v431
    %v728 = vunpack.c.l.b16 %v432
    %v729 = vunpack.c.l.b16 %v433
    %v730 = vunpack.c.h.b16 %v433
    %v731 = vunpack.c.l.b16 %v434
    %v732 = vunpack.c.h.b16 %v434
    %v733 = vunpack.c.l.b16 %v435
    %v734 = vunpack.c.h.b16 %v435
    %v735 = vunpack.c.l.b16 %v436
    %v736 = vunpack.c.l.b16 %v437
    %v737 = vunpack.c.h.b16 %v437
    %v738 = vunpack.c.l.b16 %v438
    %v739 = vunpack.c.h.b16 %v438
    %v740 = vunpack.c.l.b16 %v439
    %v741 = vunpack.c.h.b16 %v439
    %v742 = vunpack.c.l.b16 %v440
    %v743 = vunpack.c.l.b16 %v441
    %v744 = vunpack.c.h.b16 %v441
    %v745 = vunpack.c.l.b16 %v442
    %v746 = vunpack.c.h.b16 %v442
    %v747 = vunpack.c.l.b16 %v443
    %v748 = vunpack.c.h.b16 %v443
    %v749 = vunpack.c.l.b16 %v444
    %v750 = vunpack.c.l.b16 %v445
    %v751 = vunpack.c.h.b16 %v445
    %v752 = vunpack.c.l.b16 %v446
    %v753 = vunpack.c.h.b16 %v446
    %v754 = vunpack.c.l.b16 %v447
    %v755 = vunpack.c.h.b16 %v447
    %v756 = vunpack.c.l.b16 %v448
    %v757 = vunpack.c.l.b16 %v449
    %v758 = vunpack.c.h.b16 %v449
    %v759 = vunpack.c.l.b16 %v450
    %v760 = vunpack.c.h.b16 %v450
    %v761 = vunpack.c.l.b16 %v451
    %v762 = vunpack.c.h.b16 %v451
    %v763 = vunpack.c.l.b16 %v452
    %v764 = vunpack.c.l.b16 %v453
    %v765 = vunpack.c.h.b16 %v453
    %v766 = vunpack.c.l.b16 %v454
    %v767 = vunpack.c.h.b16 %v454
    %v768 = vunpack.c.l.b16 %v455
    %v769 = vunpack.c.h.b16 %v455
    %v770 = vunpack.c.l.b16 %v456
    %v771 = vunpack.c.l.b16 %v457
    %v772 = vunpack.c.h.b16 %v457
    %v773 = vunpack.c.l.b16 %v458
    %v774 = vunpack.c.h.b16 %v458
    %v775 = vunpack.c.l.b16 %v459
    %v776 = vunpack.c.h.b16 %v459
    %v777 = vunpack.c.l.b16 %v460
    %v778 = vunpack.c.l.b16 %v461
    %v779 = vunpack.c.h.b16 %v461
    %v780 = vunpack.c.l.b16 %v462
    %v781 = vunpack.c.h.b16 %v462
    %v782 = vunpack.c.l.b16 %v463
    %v783 = vunpack.c.h.b16 %v463
    %v784 = vunpack.c.l.b16 %v464
    %v785 = vunpack.c.l.b16 %v465
    %v786 = vunpack.c.h.b16 %v465
    %v787 = vunpack.c.l.b16 %v466
    %v788 = vunpack.c.h.b16 %v466
    %v789 = vunpack.c.l.b16 %v467
    %v790 = vunpack.c.h.b16 %v467
    %v791 = vunpack.c.l.b16 %v468
    %v792 = vunpack.c.l.b16 %v469
    %v793 = vunpack.c.h.b16 %v469
    %v794 = vunpack.c.l.b16 %v470
    %v795 = vunpack.c.h.b16 %v470
    %v796 = vunpack.c.l.b16 %v471
    %v797 = vunpack.c.h.b16 %v471
    %v798 = vunpack.c.l.b16 %v472
    %v799 = vunpack.c.l.b16 %v473
    %v800 = vunpack.c.h.b16 %v473
    %v801 = vunpack.c.l.b16 %v474
    %v802 = vunpack.c.h.b16 %v474
    %v803 = vunpack.c.l.b16 %v475
    %v804 = vunpack.c.h.b16 %v475
    %v805 = vunpack.c.l.b16 %v476
    %v806 = vunpack.c.l.b16 %v477
    %v807 = vunpack.c.h.b16 %v477
    %v808 = vunpack.c.l.b16 %v478
    %v809 = vunpack.c.h.b16 %v478
    %v810 = vunpack.c.l.b16 %v479
    %v811 = vunpack.c.h.b16 %v479
    %v812 = vunpack.c.l.b16 %v480
    %v813 = vunpack.c.l.b16 %v481
    %v814 = vunpack.c.h.b16 %v481
    %v815 = vunpack.c.l.b16 %v482
    %v816 = vunpack.c.h.b16 %v482
    %v817 = vunpack.c.l.b16 %v483
    %v818 = vunpack.c.h.b16 %v483
    %v819 = vunpack.c.l.b16 %v484
    %v820 = vunpack.c.l.b16 %v485
    %v821 = vunpack.c.h.b16 %v485
    %v822 = vunpack.c.l.b16 %v486
    %v823 = vunpack.c.h.b16 %v486
    %v824 = vunpack.c.l.b16 %v487
    %v825 = vunpack.c.h.b16 %v487
    %v826 = vunpack.c.l.b16 %v488
    %v827 = vunpack.c.l.b16 %v489
    %v828 = vunpack.c.h.b16 %v489
    %v829 = vunpack.c.l.b16 %v490
    %v830 = vunpack.c.h.b16 %v490
    %v831 = vunpack.c.l.b16 %v491
    %v832 = vunpack.c.h.b16 %v491
    %v833 = vunpack.c.l.b16 %v492
    %v834 = vunpack.c.l.b16 %v493
    %v835 = vunpack.c.h.b16 %v493
    %v836 = vunpack.c.l.b16 %v494
    %v837 = vunpack.c.h.b16 %v494
    %v838 = vunpack.c.l.b16 %v495
    %v839 = vunpack.c.h.b16 %v495
    %v840 = vunpack.c.l.b16 %v496
    %v841 = vunpack.c.l.b16 %v497
    %v842 = vunpack.c.h.b16 %v497
    %v843 = vunpack.c.l.b16 %v498
    %v844 = vunpack.c.h.b16 %v498
    %v845 = vunpack.c.l.b16 %v499
    %v846 = vunpack.c.h.b16 %v499
    %v847 = vunpack.c.l.b16 %v500
    %v848 = vunpack.c.l.b16 %v501
    %v849 = vunpack.c.h.b16 %v501
    %v850 = vunpack.c.l.b16 %v502
    %v851 = vunpack.c.h.b16 %v502
    %v852 = vunpack.c.l.b16 %v503
    %v853 = vunpack.c.h.b16 %v503
    %v854 = vunpack.c.l.b16 %v504
    %v855 = vunpack.c.l.b16 %v505
    %v856 = vunpack.c.h.b16 %v505
    %v857 = vunpack.c.l.b16 %v506
    %v858 = vunpack.c.h.b16 %v506
    %v859 = vunpack.c.l.b16 %v507
    %v860 = vunpack.c.h.b16 %v507
    %v861 = vunpack.c.l.b16 %v508
    %v862 = vunpack.c.l.b16 %v509
    %v863 = vunpack.c.h.b16 %v509
    %v864 = vunpack.c.l.b16 %v510
    %v865 = vunpack.c.h.b16 %v510
    %v866 = vunpack.c.l.b16 %v511
    %v867 = vunpack.c.h.b16 %v511
    %v868 = vunpack.c.l.b16 %v512
    %v869 = vunpack.c.l.b16 %v513
    %v870 = vunpack.c.h.b16 %v513
    %v871 = vunpack.c.l.b16 %v514
    %v872 = vunpack.c.h.b16 %v514
    %v873 = vunpack.c.l.b16 %v515
    %v874 = vunpack.c.h.b16 %v515
    %v875 = vunpack.c.l.b16 %v516
    %v876 = vunpack.c.l.b16 %v517
    %v877 = vunpack.c.h.b16 %v517
    %v878 = vunpack.c.l.b16 %v518
    %v879 = vunpack.c.h.b16 %v518
    %v880 = vunpack.c.l.b16 %v519
    %v881 = vunpack.c.h.b16 %v519
    %v882 = vunpack.c.l.b16 %v520
    %v883 = vunpack.c.l.b16 %v521
    %v884 = vunpack.c.h.b16 %v521
    %v885 = vunpack.c.l.b16 %v522
    %v886 = vunpack.c.h.b16 %v522
    %v887 = vunpack.c.l.b16 %v523
    %v888 = vunpack.c.h.b16 %v523
    %v889 = vunpack.c.l.b16 %v524
    %v890 = vunpack.c.l.b16 %v525
    %v891 = vunpack.c.h.b16 %v525
    %v892 = vunpack.c.l.b16 %v526
    %v893 = vunpack.c.h.b16 %v526
    %v894 = vunpack.c.l.b16 %v527
    %v895 = vunpack.c.h.b16 %v527
    %v896 = vunpack.c.l.b16 %v528
    %v897 = vunpack.c.l.b16 %v529
    %v898 = vunpack.c.h.b16 %v529
    %v899 = vunpack.c.l.b16 %v530
    %v900 = vunpack.c.h.b16 %v530
    %v901 = vunpack.c.l.b16 %v531
    %v902 = vunpack.c.h.b16 %v531
    %v903 = vunpack.c.l.b16 %v532
    %v904 = vunpack.c.l.b16 %v533
    %v905 = vunpack.c.h.b16 %v533
    %v906 = vunpack.c.l.b16 %v534
    %v907 = vunpack.c.h.b16 %v534
    %v908 = vunpack.c.l.b16 %v535
    %v909 = vunpack.c.h.b16 %v535
    %v910 = vunpack.c.l.b16 %v536
    %v911 = vunpack.c.l.b16 %v537
    %v912 = vunpack.c.h.b16 %v537
    %v913 = vunpack.c.l.b16 %v538
    %v914 = vunpack.c.h.b16 %v538
    %v915 = vunpack.c.l.b16 %v539
    %v916 = vunpack.c.h.b16 %v539
    %v917 = vunpack.c.l.b16 %v540
    %v918 = vunpack.c.l.b16 %v541
    %v919 = vunpack.c.h.b16 %v541
    %v920 = vunpack.c.l.b16 %v542
    %v921 = vunpack.c.h.b16 %v542
    %v922 = vunpack.c.l.b16 %v543
    %v923 = vunpack.c.h.b16 %v543
    %v924 = vunpack.c.l.b16 %v544
    %v925 = vunpack.c.l.b16 %v545
    %v926 = vunpack.c.h.b16 %v545
    %v927 = vunpack.c.l.b16 %v546
    %v928 = vunpack.c.h.b16 %v546
    %v929 = vunpack.c.l.b16 %v547
    %v930 = vunpack.c.h.b16 %v547
    %v931 = vunpack.c.l.b16 %v548
    %v932 = vunpack.c.l.b16 %v549
    %v933 = vunpack.c.h.b16 %v549
    %v934 = vunpack.c.l.b16 %v550
    %v935 = vunpack.c.h.b16 %v550
    %v936 = vunpack.c.l.b16 %v551
    %v937 = vunpack.c.h.b16 %v551
    %v938 = vunpack.c.l.b16 %v552
    %v939 = vunpack.c.l.b16 %v553
    %v940 = vunpack.c.h.b16 %v553
    %v941 = vunpack.c.l.b16 %v554
    %v942 = vunpack.c.h.b16 %v554
    %v943 = vunpack.c.l.b16 %v555
    %v944 = vunpack.c.h.b16 %v555
    %v945 = vunpack.c.l.b16 %v556
    %v946 = vpack.c.b16 %v729, %v722
    %v947 = vpack.c.b16 %v730, %v723
    %v948 = vpack.c.b16 %v731, %v724
    %v949 = vpack.c.b16 %v732, %v725
    %v950 = vpack.c.b16 %v733, %v726
    %v951 = vpack.c.b16 %v734, %v727
    %v952 = vpack.c.b16 %v735, %v728
    %v953 = vpack.c.b16 %v743, %v736
    %v954 = vpack.c.b16 %v744, %v737
    %v955 = vpack.c.b16 %v745, %v738
    %v956 = vpack.c.b16 %v746, %v739
    %v957 = vpack.c.b16 %v747, %v740
    %v958 = vpack.c.b16 %v748, %v741
    %v959 = vpack.c.b16 %v749, %v742
    %v960 = vpack.c.b16 %v757, %v750
    %v961 = vpack.c.b16 %v758, %v751
    %v962 = vpack.c.b16 %v759, %v752
    %v963 = vpack.c.b16 %v760, %v753
    %v964 = vpack.c.b16 %v761, %v754
    %v965 = vpack.c.b16 %v762, %v755
    %v966 = vpack.c.b16 %v763, %v756
    %v967 = vpack.c.b16 %v771, %v764
    %v968 = vpack.c.b16 %v772, %v765
    %v969 = vpack.c.b16 %v773, %v766
    %v970 = vpack.c.b16 %v774, %v767
    %v971 = vpack.c.b16 %v775, %v768
    %v972 = vpack.c.b16 %v776, %v769
    %v973 = vpack.c.b16 %v777, %v770
    %v974 = vpack.c.b16 %v785, %v778
    %v975 = vpack.c.b16 %v786, %v779
    %v976 = vpack.c.b16 %v787, %v780
    %v977 = vpack.c.b16 %v788, %v781
    %v978 = vpack.c.b16 %v789, %v782
    %v979 = vpack.c.b16 %v790, %v783
    %v980 = vpack.c.b16 %v791, %v784
    %v981 = vpack.c.b16 %v799, %v792
    %v982 = vpack.c.b16 %v800, %v793
    %v983 = vpack.c.b16 %v801, %v794
    %v984 = vpack.c.b16 %v802, %v795
    %v985 = vpack.c.b16 %v803, %v796
    %v986 = vpack.c.b16 %v804, %v797
    %v987 = vpack.c.b16 %v805, %v798
    %v988 = vpack.c.b16 %v813, %v806
    %v989 = vpack.c.b16 %v814, %v807
    %v990 = vpack.c.b16 %v815, %v808
    %v991 = vpack.c.b16 %v816, %v809
    %v992 = vpack.c.b16 %v817, %v810
    %v993 = vpack.c.b16 %v818, %v811
    %v994 = vpack.c.b16 %v819, %v812
    %v995 = vpack.c.b16 %v827, %v820
    %v996 = vpack.c.b16 %v828, %v821
    %v997 = vpack.c.b16 %v829, %v822
    %v998 = vpack.c.b16 %v830, %v823
    %v999 = vpack.c.b16 %v831, %v824
    %v1000 = vpack.c.b16 %v832, %v825
    %v1001 = vpack.c.b16 %v833, %v826
    %v1002 = vpack.c.b16 %v841, %v834
    %v1003 = vpack.c.b16 %v842, %v835
    %v1004 = vpack.c.b16 %v843, %v836
    %v1005 = vpack.c.b16 %v844, %v837
    %v1006 = vpack.c.b16 %v845, %v838
    %v1007 = vpack.c.b16 %v846, %v839
    %v1008 = vpack.c.b16 %v847, %v840
    %v1009 = vpack.c.b16 %v855, %v848
    %v1010 = vpack.c.b16 %v856, %v849
    %v1011 = vpack.c.b16 %v857, %v850
    %v1012 = vpack.c.b16 %v858, %v851
    %v1013 = vpack.c.b16 %v859, %v852
    %v1014 = vpack.c.b16 %v860, %v853
    %v1015 = vpack.c.b16 %v861, %v854
    %v1016 = vpack.c.b16 %v869, %v862
    %v1017 = vpack.c.b16 %v870, %v863
    %v1018 = vpack.c.b16 %v871, %v864
    %v1019 = vpack.c.b16 %v872, %v865
    %v1020 = vpack.c.b16 %v873, %v866
    %v1021 = vpack.c.b16 %v874, %v867
    %v1022 = vpack.c.b16 %v875, %v868
    %v1023 = vpack.c.b16 %v883, %v876
    %v1024 = vpack.c.b16 %v884, %v877
    %v1025 = vpack.c.b16 %v885, %v878
    %v1026 = vpack.c.b16 %v886, %v879
    %v1027 = vpack.c.b16 %v887, %v880
    %v1028 = vpack.c.b16 %v888, %v881
    %v1029 = vpack.c.b16 %v889, %v882
    %v1030 = vpack.c.b16 %v897, %v890
    %v1031 = vpack.c.b16 %v898, %v891
    %v1032 = vpack.c.b16 %v899, %v892
    %v1033 = vpack.c.b16 %v900, %v893
    %v1034 = vpack.c.b16 %v901, %v894
    %v1035 = vpack.c.b16 %v902, %v895
    %v1036 = vpack.c.b16 %v903, %v896
    %v1037 = vpack.c.b16 %v911, %v904
    %v1038 = vpack.c.b16 %v912, %v905
    %v1039 = vpack.c.b16 %v913, %v906
    %v1040 = vpack.c.b16 %v914, %v907
    %v1041 = vpack.c.b16 %v915, %v908
    %v1042 = vpack.c.b16 %v916, %v909
    %v1043 = vpack.c.b16 %v917, %v910
    %v1044 = vpack.c.b16 %v925, %v918
    %v1045 = vpack.c.b16 %v926, %v919
    %v1046 = vpack.c.b16 %v927, %v920
    %v1047 = vpack.c.b16 %v928, %v921
    %v1048 = vpack.c.b16 %v929, %v922
    %v1049 = vpack.c.b16 %v930, %v923
    %v1050 = vpack.c.b16 %v931, %v924
    %v1051 = vpack.c.b16 %v939, %v932
    %v1052 = vpack.c.b16 %v940, %v933
    %v1053 = vpack.c.b16 %v941, %v934
    %v1054 = vpack.c.b16 %v942, %v935
    %v1055 = vpack.c.b16 %v943, %v936
    %v1056 = vpack.c.b16 %v944, %v937
    %v1057 = vpack.c.b16 %v945, %v938
    %1170 = vmatprep.subr.bf16.mxu0 %v947
    %1171 = vmatpush1.bf16.msra.mxu0 %v946
    %1172 = vmatprep.subr.bf16.mxu0 %v954
    %1173 = vmatpush1.bf16.msra.mxu0 %v953
    %1174 = vmatprep.subr.bf16.mxu0 %v961
    %1175 = vmatpush1.bf16.msra.mxu0 %v960
    %1176 = vmatprep.subr.bf16.mxu0 %v968
    %1177 = vmatpush1.bf16.msra.mxu0 %v967
    %1178 = vmatprep.subr.bf16.mxu0 %v975
    %1179 = vmatpush1.bf16.msra.mxu0 %v974
    %1180 = vmatprep.subr.bf16.mxu0 %v982
    %1181 = vmatpush1.bf16.msra.mxu0 %v981
    %1182 = vmatprep.subr.bf16.mxu0 %v989
    %1183 = vmatpush1.bf16.msra.mxu0 %v988
    %1184 = vmatprep.subr.bf16.mxu0 %v996
    %1185 = vmatpush1.bf16.msra.mxu0 %v995
    %1186 = vmatprep.subr.bf16.mxu0 %v1003
    %1187 = vmatpush1.bf16.msra.mxu0 %v1002
    %1188 = vmatprep.subr.bf16.mxu0 %v1010
    %1189 = vmatpush1.bf16.msra.mxu0 %v1009
    %1190 = vmatprep.subr.bf16.mxu0 %v1017
    %1191 = vmatpush1.bf16.msra.mxu0 %v1016
    %1192 = vmatprep.subr.bf16.mxu0 %v1024
    %1193 = vmatpush1.bf16.msra.mxu0 %v1023
    %1194 = vmatprep.subr.bf16.mxu0 %v1031
    %1195 = vmatpush1.bf16.msra.mxu0 %v1030
    %1196 = vmatprep.subr.bf16.mxu0 %v1038
    %1197 = vmatpush1.bf16.msra.mxu0 %v1037
    %1198 = vmatprep.subr.bf16.mxu0 %v1045
    %1199 = vmatpush1.bf16.msra.mxu0 %v1044
    %1200 = vmatprep.subr.bf16.mxu0 %v1052
    %1201 = vmatpush1.bf16.msra.mxu0 %v1051
    %1202 = vmatprep.mubr.bf16.mxu0 %v428
    %1203 = vmatmul.mubr.bf16.gmra.mrb[0].mxu0 %v427
    %v1204 = vpop.f32.mrb[0].mxu0
    %v1205 = vadd.f32 %v562, %v1204
    %v1206 = vpop.f32.mrb[0].mxu0
    %v1207 = vadd.f32 %v566, %v1206
    %v1208 = vpop.f32.mrb[0].mxu0
    %v1209 = vpop.f32.mrb[0].mxu0
    %1210 = vdwg.mxu0
    %1211 = vmatprep.subr.bf16.mxu0 %v949
    %1212 = vmatpush1.bf16.msra.mxu0 %v948
    %1213 = vmatprep.subr.bf16.mxu0 %v956
    %1214 = vmatpush1.bf16.msra.mxu0 %v955
    %1215 = vmatprep.subr.bf16.mxu0 %v963
    %1216 = vmatpush1.bf16.msra.mxu0 %v962
    %1217 = vmatprep.subr.bf16.mxu0 %v970
    %1218 = vmatpush1.bf16.msra.mxu0 %v969
    %1219 = vmatprep.subr.bf16.mxu0 %v977
    %1220 = vmatpush1.bf16.msra.mxu0 %v976
    %1221 = vmatprep.subr.bf16.mxu0 %v984
    %1222 = vmatpush1.bf16.msra.mxu0 %v983
    %1223 = vmatprep.subr.bf16.mxu0 %v991
    %1224 = vmatpush1.bf16.msra.mxu0 %v990
    %1225 = vmatprep.subr.bf16.mxu0 %v998
    %1226 = vmatpush1.bf16.msra.mxu0 %v997
    %1227 = vmatprep.subr.bf16.mxu0 %v1005
    %1228 = vmatpush1.bf16.msra.mxu0 %v1004
    %1229 = vmatprep.subr.bf16.mxu0 %v1012
    %1230 = vmatpush1.bf16.msra.mxu0 %v1011
    %1231 = vmatprep.subr.bf16.mxu0 %v1019
    %1232 = vmatpush1.bf16.msra.mxu0 %v1018
    %1233 = vmatprep.subr.bf16.mxu0 %v1026
    %1234 = vmatpush1.bf16.msra.mxu0 %v1025
    %1235 = vmatprep.subr.bf16.mxu0 %v1033
    %1236 = vmatpush1.bf16.msra.mxu0 %v1032
    %1237 = vmatprep.subr.bf16.mxu0 %v1040
    %1238 = vmatpush1.bf16.msra.mxu0 %v1039
    %1239 = vmatprep.subr.bf16.mxu0 %v1047
    %1240 = vmatpush1.bf16.msra.mxu0 %v1046
    %1241 = vmatprep.subr.bf16.mxu0 %v1054
    %1242 = vmatpush1.bf16.msra.mxu0 %v1053
    %1243 = vmatprep.mubr.bf16.mxu0 %v428
    %1244 = vmatmul.mubr.bf16.gmra.mrb[0].mxu0 %v427
    %v1245 = vpop.f32.mrb[0].mxu0
    %v1246 = vadd.f32 %v570, %v1245
    %v1247 = vpop.f32.mrb[0].mxu0
    %v1248 = vadd.f32 %v574, %v1247
    %v1249 = vpop.f32.mrb[0].mxu0
    %v1250 = vpop.f32.mrb[0].mxu0
    %1251 = vdwg.mxu0
    %1252 = vmatprep.subr.bf16.mxu0 %v951
    %1253 = vmatpush1.bf16.msra.mxu0 %v950
    %1254 = vmatprep.subr.bf16.mxu0 %v958
    %1255 = vmatpush1.bf16.msra.mxu0 %v957
    %1256 = vmatprep.subr.bf16.mxu0 %v965
    %1257 = vmatpush1.bf16.msra.mxu0 %v964
    %1258 = vmatprep.subr.bf16.mxu0 %v972
    %1259 = vmatpush1.bf16.msra.mxu0 %v971
    %1260 = vmatprep.subr.bf16.mxu0 %v979
    %1261 = vmatpush1.bf16.msra.mxu0 %v978
    %1262 = vmatprep.subr.bf16.mxu0 %v986
    %1263 = vmatpush1.bf16.msra.mxu0 %v985
    %1264 = vmatprep.subr.bf16.mxu0 %v993
    %1265 = vmatpush1.bf16.msra.mxu0 %v992
    %1266 = vmatprep.subr.bf16.mxu0 %v1000
    %1267 = vmatpush1.bf16.msra.mxu0 %v999
    %1268 = vmatprep.subr.bf16.mxu0 %v1007
    %1269 = vmatpush1.bf16.msra.mxu0 %v1006
    %1270 = vmatprep.subr.bf16.mxu0 %v1014
    %1271 = vmatpush1.bf16.msra.mxu0 %v1013
    %1272 = vmatprep.subr.bf16.mxu0 %v1021
    %1273 = vmatpush1.bf16.msra.mxu0 %v1020
    %1274 = vmatprep.subr.bf16.mxu0 %v1028
    %1275 = vmatpush1.bf16.msra.mxu0 %v1027
    %1276 = vmatprep.subr.bf16.mxu0 %v1035
    %1277 = vmatpush1.bf16.msra.mxu0 %v1034
    %1278 = vmatprep.subr.bf16.mxu0 %v1042
    %1279 = vmatpush1.bf16.msra.mxu0 %v1041
    %1280 = vmatprep.subr.bf16.mxu0 %v1049
    %1281 = vmatpush1.bf16.msra.mxu0 %v1048
    %1282 = vmatprep.subr.bf16.mxu0 %v1056
    %1283 = vmatpush1.bf16.msra.mxu0 %v1055
    %1284 = vmatprep.mubr.bf16.mxu0 %v428
    %1285 = vmatmul.mubr.bf16.gmra.mrb[0].mxu0 %v427
    %v1286 = vpop.f32.mrb[0].mxu0
    %v1287 = vadd.f32 %v578, %v1286
    %v1288 = vpop.f32.mrb[0].mxu0
    %v1289 = vadd.f32 %v582, %v1288
    %v1290 = vpop.f32.mrb[0].mxu0
    %v1291 = vpop.f32.mrb[0].mxu0
    %1292 = vdwg.mxu0
    %1293 = vmatprep.subr.bf16.mxu0 0
    %1294 = vmatpush1.bf16.msra.mxu0 %v952
    %1295 = vmatprep.subr.bf16.mxu0 0
    %1296 = vmatpush1.bf16.msra.mxu0 %v959
    %1297 = vmatprep.subr.bf16.mxu0 0
    %1298 = vmatpush1.bf16.msra.mxu0 %v966
    %1299 = vmatprep.subr.bf16.mxu0 0
    %1300 = vmatpush1.bf16.msra.mxu0 %v973
    %1301 = vmatprep.subr.bf16.mxu0 0
    %1302 = vmatpush1.bf16.msra.mxu0 %v980
    %1303 = vmatprep.subr.bf16.mxu0 0
    %1304 = vmatpush1.bf16.msra.mxu0 %v987
    %1305 = vmatprep.subr.bf16.mxu0 0
    %1306 = vmatpush1.bf16.msra.mxu0 %v994
    %1307 = vmatprep.subr.bf16.mxu0 0
    %1308 = vmatpush1.bf16.msra.mxu0 %v1001
    %1309 = vmatprep.subr.bf16.mxu0 0
    %1310 = vmatpush1.bf16.msra.mxu0 %v1008
    %1311 = vmatprep.subr.bf16.mxu0 0
    %1312 = vmatpush1.bf16.msra.mxu0 %v1015
    %1313 = vmatprep.subr.bf16.mxu0 0
    %1314 = vmatpush1.bf16.msra.mxu0 %v1022
    %1315 = vmatprep.subr.bf16.mxu0 0
    %1316 = vmatpush1.bf16.msra.mxu0 %v1029
    %1317 = vmatprep.subr.bf16.mxu0 0
    %1318 = vmatpush1.bf16.msra.mxu0 %v1036
    %1319 = vmatprep.subr.bf16.mxu0 0
    %1320 = vmatpush1.bf16.msra.mxu0 %v1043
    %1321 = vmatprep.subr.bf16.mxu0 0
    %1322 = vmatpush1.bf16.msra.mxu0 %v1050
    %1323 = vmatprep.subr.bf16.mxu0 0
    %1324 = vmatpush1.bf16.msra.mxu0 %v1057
    %1325 = vmatprep.mubr.bf16.mxu0 %v428
    %1326 = vmatmul.mubr.bf16.gmra.mrb[0].mxu0 %v427
    %v1327 = vpop.f32.mrb[0].mxu0
    %v1328 = vadd.f32 %v586, %v1327
    %v1329 = vpop.f32.mrb[0].mxu0
    %v1330 = vpop.f32.mrb[0].mxu0
    %v1331 = vpop.f32.mrb[0].mxu0
    %1332 = vdwg.mxu0
    %v1333 = vpack.c.bf16 %v1205, %v1205
    %v1334 = vpack.c.bf16 %v1207, %v1207
    %v1335 = vpack.c.bf16 %v1246, %v1246
    %v1336 = vpack.c.bf16 %v1248, %v1248
    %v1337 = vpack.c.bf16 %v1287, %v1287
    %v1338 = vpack.c.bf16 %v1289, %v1289
    %v1339 = vpack.c.bf16 %v1328, %v1328
    %v1340 = vtanh.bf16.pop %v1333
    %v1341 = vtanh.bf16.pop %v1334
    %v1342 = vtanh.bf16.pop %v1335
    %v1343 = vtanh.bf16.pop %v1336
    %v1344 = vtanh.bf16.pop %v1337
    %v1345 = vtanh.bf16.pop %v1338
    %v1346 = vtanh.bf16.pop %v1339
    %v1354 = vunpack.c.l.b16 %v1340
    %v1355 = vunpack.c.l.b16 %v1341
    %v1356 = vunpack.c.l.b16 %v1342
    %v1357 = vunpack.c.l.b16 %v1343
    %v1358 = vunpack.c.l.b16 %v1344
    %v1359 = vunpack.c.l.b16 %v1345
    %v1360 = vunpack.c.l.b16 %v1346
    %v1361 = vpack.c.b16 %v1355, %v1354
    %v1362 = vpack.c.b16 %v1357, %v1356
    %v1363 = vpack.c.b16 %v1359, %v1358
    %v1364 = vpack.c.b16 %v1360, %v1360
    %1369 = vst [vmem:[#allocation2] sm:$0xff] %v1361
    %1370 = vst [vmem:[#allocation2 + $0x8] sm:$0xff] %v1362
    %1371 = vst [vmem:[#allocation2 + $0x10] sm:$0xff] %v1363
    %vm1372 = vcmask 125952
    %1373 = vst.msk [vmem:[#allocation2 + $0x18] sm:$0xf] %vm1372, %v1364
    // Predicated region
    $region30: #{tpu_custom_call.1} parent=1 // pred_check
      _
    $region31: #{tpu_custom_call.1} parent=1 // pred_check_branch
      %1375 = sbr.rel (0) target = $region33
    $region32: #{tpu_custom_call.1} parent=1 // pred_region
      %s1377 = ssub.s32 448, 448
      %1378 = vsyncadd [#allocation3], %s1377
      %s1380 = sshll.u32 [#allocation2], 4
      %s1381 = int_to_ptr.vmem [resolvable:$true] %s1380
      %1383 = dma.vmem_to_hbm [thread:$0]  %s1381, 448, %s7, [#allocation3]
    $region33: #{tpu_custom_call.1} parent=1 // pred_fallthru
      _
    // Predicated region
    $region34: #{tpu_custom_call.1} parent=1 // pred_check
      _
    $region35: #{tpu_custom_call.1} parent=1 // pred_check_branch
      %1385 = sbr.rel (0) target = $region37
    $region36: #{tpu_custom_call.1} parent=1 // pred_region
      %1386 = dma.done [#allocation3], 448
    $region37: #{tpu_custom_call.1} parent=1 // pred_fallthru
      _
    %1387 = vsyncpa [#allocation3], 1

</llo_original>
